<compile_context>
chip_gen: v7x
topology: tpu7x:2x2x1
jax: 0.10.0
libtpu: 0.0.40
codegen_flags: <defaults>
</compile_context>

<pallas_src>
import functools

import jax
import jax.numpy as jnp
from jax.experimental import pallas as pl
from jax.experimental.pallas import tpu as pltpu

_CHUNK = 128      # lane-chunk width inside the kernel (keeps h at <= 16 vregs)
_SMALL_MAX = 256  # batches up to this size take the no-grid single-block path


def valuenet_kernel(xT_ref, w1_ref, b1_ref, w2_ref, b2_ref, o_ref):
    n_feat = xT_ref.shape[0]          # 4   (static)
    H = w1_ref.shape[0]               # 128 (static)
    W = xT_ref.shape[1]               # block width (static)
    ch = min(_CHUNK, W)

    # Hoisted once per kernel invocation and reused by every lane-chunk:
    # pre-broadcast weight columns / bias to chunk width so the inner loop
    # issues no redundant broadcast_in_dim.
    w1_b = [jnp.broadcast_to(w1_ref[:, k:k + 1], (H, ch)) for k in range(n_feat)]
    b1_b = jnp.broadcast_to(b1_ref[...], (H, ch))
    w2_b = jnp.broadcast_to(w2_ref[...], (H, ch))
    b2 = b2_ref[0]                    # scalar bias from SMEM

    # Static lane-chunk loop: per chunk, layer1 + ReLU + layer2 reduce + store,
    # so nothing wider than (H, ch) stays live.
    for start in range(0, W, ch):
        width = min(ch, W - start)
        xT_c = xT_ref[:, start:start + width]
        if width == ch:
            w1c, b1c, w2c = w1_b, b1_b, w2_b
        else:                          # ragged tail chunk (static slice)
            w1c = [w[:, :width] for w in w1_b]
            b1c, w2c = b1_b[:, :width], w2_b[:, :width]

        # Layer 1: h[H, width] = relu(sum_k W1[:, k] (outer) xT[k, :] + b1)  (VPU only)
        h = b1c + w1c[0] * xT_c[0:1, :]
        for k in range(1, n_feat):     # static unroll, 4 FMAs
            h = h + w1c[k] * xT_c[k:k + 1, :]
        h = jnp.maximum(h, 0.0)

        # Layer 2: v[1, width] = w2 . h  (sublane reduce on the XLU) + scalar bias.
        v = jnp.sum(w2c * h, axis=0, keepdims=True) + b2
        o_ref[:, start:start + width] = v.astype(o_ref.dtype)


def _round_up(a, m):
    return ((a + m - 1) // m) * m


@functools.partial(jax.jit, static_argnames=("tb", "features_first"))
def value_net_forward(x, w1, b1, w2, b2, *, tb=2048, features_first=False):
    """Forward pass identical to relu(x @ w1.T + b1) @ w2.T + b2.

    x: (B, 4) f32 (or (4, B) if features_first=True, skipping the transpose pass).
    PyTorch-layout params: w1 (128, 4), b1 (128,), w2 (1, 128), b2 (1,).
    Returns (B, 1) f32.
    """
    if features_first:
        xT = x.astype(jnp.float32)                    # already (4, B): no HBM pre-pass
        n_feat, B = xT.shape
    else:
        B, n_feat = x.shape
        xT = x.astype(jnp.float32).T                  # (4, B): single transpose pass

    H = w1.shape[0]
    w1f = w1.astype(jnp.float32)                      # (H, 4)
    b1c = b1.reshape(H, 1).astype(jnp.float32)        # lane-broadcast column
    w2c = w2.reshape(H, 1).astype(jnp.float32)        # column for sublane reduce
    b2c = b2.reshape(1).astype(jnp.float32)           # SMEM scalar

    ce = pl.CostEstimate(
        flops=2 * B * H * (n_feat + 1),
        transcendentals=0,
        bytes_accessed=4 * (n_feat * B + H * n_feat + 2 * H + 1 + B),
    )

    if B <= _SMALL_MAX:
        # No-grid, full-block call: zero pipeline bookkeeping for tiny batches;
        # the in-kernel chunk loop keeps vreg pressure low anyway.
        out = pl.pallas_call(
            valuenet_kernel,
            out_shape=jax.ShapeDtypeStruct((1, B), jnp.float32),
            in_specs=[
                pl.BlockSpec(memory_space=pltpu.MemorySpace.VMEM),   # xT (4, B)
                pl.BlockSpec(memory_space=pltpu.MemorySpace.VMEM),   # W1 (H, 4)
                pl.BlockSpec(memory_space=pltpu.MemorySpace.VMEM),   # b1 (H, 1)
                pl.BlockSpec(memory_space=pltpu.MemorySpace.VMEM),   # W2 (H, 1)
                pl.BlockSpec(memory_space=pltpu.MemorySpace.SMEM),   # b2 scalar
            ],
            out_specs=pl.BlockSpec(memory_space=pltpu.MemorySpace.VMEM),
            cost_estimate=ce,
        )(xT, w1f, b1c, w2c, b2c)
    else:
        # Lane-tiled path for rollout batches. Block width chosen so the grid
        # always has >= 2 steps (both v7x TensorCores get work) and steps are
        # large enough to amortize per-step pipeline overhead. Boundary blocks
        # are partial (no pre-pad); junk lanes are column-local and discarded.
        n_steps = max(2, pl.cdiv(B, tb))
        tb_eff = _round_up(pl.cdiv(B, n_steps), 256)
        grid = pl.cdiv(B, tb_eff)
        out = pl.pallas_call(
            valuenet_kernel,
            out_shape=jax.ShapeDtypeStruct((1, B), jnp.float32),
            grid=(grid,),
            in_specs=[
                pl.BlockSpec((n_feat, tb_eff), lambda i: (0, i)),    # x lanes tile
                pl.BlockSpec((H, n_feat), lambda i: (0, 0)),         # W1 resident
                pl.BlockSpec((H, 1), lambda i: (0, 0)),              # b1 resident
                pl.BlockSpec((H, 1), lambda i: (0, 0)),              # W2 resident
                pl.BlockSpec(memory_space=pltpu.MemorySpace.SMEM),   # b2 scalar
            ],
            out_specs=pl.BlockSpec((1, tb_eff), lambda i: (0, i)),
            compiler_params=pltpu.CompilerParams(
                dimension_semantics=("parallel",)),   # 2 TCs/chip on v7x
            cost_estimate=ce,
        )(xT, w1f, b1c, w2c, b2c)

    return out.reshape(B, 1)


def init_params(key):
    """nn.Linear default init, U(-1/sqrt(fan_in), +1/sqrt(fan_in)), PyTorch layout."""
    k1, k2, k3, k4 = jax.random.split(key, 4)
    bound1 = 1.0 / jnp.sqrt(4.0)
    bound2 = 1.0 / jnp.sqrt(128.0)
    w1 = jax.random.uniform(k1, (128, 4), jnp.float32, -bound1, bound1)   # (out, in)
    b1 = jax.random.uniform(k2, (128,), jnp.float32, -bound1, bound1)
    w2 = jax.random.uniform(k3, (1, 128), jnp.float32, -bound2, bound2)   # (out, in)
    b2 = jax.random.uniform(k4, (1,), jnp.float32, -bound2, bound2)
    return w1, b1, w2, b2


def reference_forward(x, w1, b1, w2, b2):
    h = jnp.maximum(x @ w1.T + b1, 0.0)
    return h @ w2.T + b2


if __name__ == "__main__":
    key = jax.random.PRNGKey(0)
    kx, kp = jax.random.split(key)
    w1, b1, w2, b2 = init_params(kp)

    # Small batch (CartPole-style 4-dim state): no-grid single-block path.
    batch = 8
    x = jax.random.normal(kx, (batch, 4), jnp.float32)
    out = jax.block_until_ready(value_net_forward(x, w1, b1, w2, b2))
    ref = reference_forward(x, w1, b1, w2, b2)
    assert out.shape == (batch, 1)
    assert jnp.allclose(out, ref, atol=1e-5, rtol=1e-5)

    # Larger rollout batch: lane-tiled "parallel" path with >= 2 grid steps.
    big = 600
    xb = jax.random.normal(kx, (big, 4), jnp.float32)
    outb = jax.block_until_ready(value_net_forward(xb, w1, b1, w2, b2))
    refb = reference_forward(xb, w1, b1, w2, b2)
    assert outb.shape == (big, 1)
    assert jnp.allclose(outb, refb, atol=1e-4, rtol=1e-4)

    # Producer-side (4, B) layout: skips the wrapper transpose HBM pre-pass.
    outT = jax.block_until_ready(
        value_net_forward(jnp.asarray(xb.T), w1, b1, w2, b2, features_first=True))
    assert outT.shape == (big, 1)
    assert jnp.allclose(outT, refb, atol=1e-4, rtol=1e-4)

    print("KERNEL_OK")
</pallas_src>

<mosaic_0001>
module attributes {stable_mosaic.version = 11 : i64} {
  func.func @valuenet_kernel(%arg0: memref<4x8xf32, #tpu.memory_space<vmem>>, %arg1: memref<128x4xf32, #tpu.memory_space<vmem>>, %arg2: memref<128x1xf32, #tpu.memory_space<vmem>>, %arg3: memref<128x1xf32, #tpu.memory_space<vmem>>, %arg4: memref<1xf32, #tpu.memory_space<smem>>, %arg5: memref<1x8xf32, #tpu.memory_space<vmem>>) attributes {dimension_semantics = [], scalar_prefetch = 0 : i64, scratch_operands = 0 : i64, tpu.core_type = #tpu.core_type<tc>} {
    %c0 = arith.constant 0 : index
    %c0_0 = arith.constant 0 : index
    %0 = vector.load %arg1[%c0, %c0_0] : memref<128x4xf32, #tpu.memory_space<vmem>>, vector<128x1xf32>
    %1 = vector.shape_cast %0 : vector<128x1xf32> to vector<128x1xf32>
    %2 = vector.broadcast %1 : vector<128x1xf32> to vector<128x8xf32>
    %c0_1 = arith.constant 0 : index
    %c1 = arith.constant 1 : index
    %3 = vector.load %arg1[%c0_1, %c1] : memref<128x4xf32, #tpu.memory_space<vmem>>, vector<128x1xf32>
    %4 = vector.shape_cast %3 : vector<128x1xf32> to vector<128x1xf32>
    %5 = vector.broadcast %4 : vector<128x1xf32> to vector<128x8xf32>
    %c0_2 = arith.constant 0 : index
    %c2 = arith.constant 2 : index
    %6 = vector.load %arg1[%c0_2, %c2] : memref<128x4xf32, #tpu.memory_space<vmem>>, vector<128x1xf32>
    %7 = vector.shape_cast %6 : vector<128x1xf32> to vector<128x1xf32>
    %8 = vector.broadcast %7 : vector<128x1xf32> to vector<128x8xf32>
    %c0_3 = arith.constant 0 : index
    %c3 = arith.constant 3 : index
    %9 = vector.load %arg1[%c0_3, %c3] : memref<128x4xf32, #tpu.memory_space<vmem>>, vector<128x1xf32>
    %10 = vector.shape_cast %9 : vector<128x1xf32> to vector<128x1xf32>
    %11 = vector.broadcast %10 : vector<128x1xf32> to vector<128x8xf32>
    %c0_4 = arith.constant 0 : index
    %c0_5 = arith.constant 0 : index
    %12 = vector.load %arg2[%c0_4, %c0_5] : memref<128x1xf32, #tpu.memory_space<vmem>>, vector<128x1xf32>
    %13 = vector.shape_cast %12 : vector<128x1xf32> to vector<128x1xf32>
    %14 = vector.broadcast %13 : vector<128x1xf32> to vector<128x8xf32>
    %c0_6 = arith.constant 0 : index
    %c0_7 = arith.constant 0 : index
    %15 = vector.load %arg3[%c0_6, %c0_7] : memref<128x1xf32, #tpu.memory_space<vmem>>, vector<128x1xf32>
    %16 = vector.shape_cast %15 : vector<128x1xf32> to vector<128x1xf32>
    %17 = vector.broadcast %16 : vector<128x1xf32> to vector<128x8xf32>
    %c0_8 = arith.constant 0 : index
    %18 = memref.load %arg4[%c0_8] : memref<1xf32, #tpu.memory_space<smem>>
    %c0_9 = arith.constant 0 : index
    %c0_10 = arith.constant 0 : index
    %19 = vector.load %arg0[%c0_9, %c0_10] : memref<4x8xf32, #tpu.memory_space<vmem>>, vector<4x8xf32>
    %20 = vector.extract_strided_slice %19 {offsets = [0, 0], sizes = [1, 8], strides = [1, 1]} : vector<4x8xf32> to vector<1x8xf32>
    %21 = vector.broadcast %20 : vector<1x8xf32> to vector<128x8xf32>
    %22 = arith.mulf %2, %21 : vector<128x8xf32>
    %23 = arith.addf %14, %22 : vector<128x8xf32>
    %24 = vector.extract_strided_slice %19 {offsets = [1, 0], sizes = [1, 8], strides = [1, 1]} : vector<4x8xf32> to vector<1x8xf32>
    %25 = vector.broadcast %24 : vector<1x8xf32> to vector<128x8xf32>
    %26 = arith.mulf %5, %25 : vector<128x8xf32>
    %27 = arith.addf %23, %26 : vector<128x8xf32>
    %28 = vector.extract_strided_slice %19 {offsets = [2, 0], sizes = [1, 8], strides = [1, 1]} : vector<4x8xf32> to vector<1x8xf32>
    %29 = vector.broadcast %28 : vector<1x8xf32> to vector<128x8xf32>
    %30 = arith.mulf %8, %29 : vector<128x8xf32>
    %31 = arith.addf %27, %30 : vector<128x8xf32>
    %32 = vector.extract_strided_slice %19 {offsets = [3, 0], sizes = [1, 8], strides = [1, 1]} : vector<4x8xf32> to vector<1x8xf32>
    %33 = vector.broadcast %32 : vector<1x8xf32> to vector<128x8xf32>
    %34 = arith.mulf %11, %33 : vector<128x8xf32>
    %35 = arith.addf %31, %34 : vector<128x8xf32>
    %cst = arith.constant 0.000000e+00 : f32
    %36 = vector.broadcast %cst : f32 to vector<128x8xf32>
    %37 = arith.maximumf %35, %36 : vector<128x8xf32>
    %38 = arith.mulf %17, %37 : vector<128x8xf32>
    %cst_11 = arith.constant dense<0.000000e+00> : vector<8xf32>
    %39 = vector.multi_reduction <add>, %38, %cst_11 [0] : vector<128x8xf32> to vector<8xf32>
    %40 = vector.shape_cast %39 : vector<8xf32> to vector<1x8xf32>
    %41 = vector.broadcast %18 : f32 to vector<1x8xf32>
    %42 = arith.addf %40, %41 : vector<1x8xf32>
    %c0_12 = arith.constant 0 : index
    %c0_13 = arith.constant 0 : index
    %43 = vector.load %arg5[%c0_12, %c0_13] : memref<1x8xf32, #tpu.memory_space<vmem>>, vector<1x8xf32>
    tpu.vector_store %arg5[%c0_12, %c0_13], %42 {strides = array<i32>} : memref<1x8xf32, #tpu.memory_space<vmem>>, vector<1x8xf32>,
    return
  }
}

</mosaic_0001>

<llo_original>
// kernel: value_net_forward.1
$region0: #{value_net_forward.1}
  #allocation0 [shape = 'u32[]', space=smem, size = 0x4, offset = 0x4, fixed_abs, tag = 'smem constant byte address 0x4 - core index']
  #allocation1 [shape = 'u32[144,128]{1,0:T(1,128)}', space=vmem, size = 0x12000, scoped, tag = 'internal scratch']
  #allocation2 [shape = 'f32[1]{0:T(128)S(6)}', space=smem, size = 0x200, scoped, tag = 'scoped memory for value_net_forward.1']
  %s0 = inlined_call_operand.vmem [shape: f32[4,8], index: 0, kind: input, shape index: {}]
  %s1 = inlined_call_operand.vmem [shape: f32[128,4], index: 1, kind: input, shape index: {}]
  %s2 = inlined_call_operand.vmem [shape: f32[128,1], index: 2, kind: input, shape index: {}]
  %s3 = inlined_call_operand.vmem [shape: f32[128,1], index: 3, kind: input, shape index: {}]
  %s4 = inlined_call_operand.<no memory space> [shape: f32[1], index: 4, kind: input, shape index: {}]
  %s5 = inlined_call_operand.hbm [shape: f32[1,8], index: 5, kind: output, shape index: {}]
  %s6 = sld [smem:[#allocation0]]
  $region30: #{value_net_forward.1} parent=0
    _
  %s8 = ssub.s32 1, %s6
  %s9 = scalar_select 0, %s8, %s6
  %10 = sst [smem:[#allocation2]] %s4
  $region1: #{value_net_forward.1} parent=0
    #allocation3 [shape = 'u8[512]{0}', space=vmem, size = 0x400, scoped, tag = 'output window, operand 0, single buffered']
    #allocation4 [shape = 's32[1]{0}', space=sflag, size = 0x4, scoped, tag = 'scoped memory for value_net_forward.1']
    %11 = vsyncpa [#allocation4], 0
    // Predicated region
    $region2: #{value_net_forward.1} parent=1 // pred_check
      _
    $region3: #{value_net_forward.1} parent=1 // pred_check_branch
      %13 = sbr.rel (0) target = $region5
    $region4: #{value_net_forward.1} parent=1 // pred_region
      _
    $region5: #{value_net_forward.1} parent=1 // pred_fallthru
      _
    // Predicated region
    $region6: #{value_net_forward.1} parent=1 // pred_check
      _
    $region7: #{value_net_forward.1} parent=1 // pred_check_branch
      %15 = sbr.rel (0) target = $region9
    $region8: #{value_net_forward.1} parent=1 // pred_region
      _
    $region9: #{value_net_forward.1} parent=1 // pred_fallthru
      _
    // Predicated region
    $region10: #{value_net_forward.1} parent=1 // pred_check
      _
    $region11: #{value_net_forward.1} parent=1 // pred_check_branch
      %17 = sbr.rel (0) target = $region13
    $region12: #{value_net_forward.1} parent=1 // pred_region
      _
    $region13: #{value_net_forward.1} parent=1 // pred_fallthru
      _
    // Predicated region
    $region14: #{value_net_forward.1} parent=1 // pred_check
      _
    $region15: #{value_net_forward.1} parent=1 // pred_check_branch
      %19 = sbr.rel (0) target = $region17
    $region16: #{value_net_forward.1} parent=1 // pred_region
      _
    $region17: #{value_net_forward.1} parent=1 // pred_fallthru
      _
    // Predicated region
    $region18: #{value_net_forward.1} parent=1 // pred_check
      _
    $region19: #{value_net_forward.1} parent=1 // pred_check_branch
      %21 = sbr.rel (0) target = $region21
    $region20: #{value_net_forward.1} parent=1 // pred_region
      _
    $region21: #{value_net_forward.1} parent=1 // pred_fallthru
      _
    %v22 = vld [vmem:[%s1] sm:$0xff]
    %v23 = vld [vmem:[%s1 + $0x8] sm:$0xff]
    %v24 = vld [vmem:[%s1 + $0x10] sm:$0xff]
    %v25 = vld [vmem:[%s1 + $0x18] sm:$0xff]
    %v26 = vld [vmem:[%s1 + $0x20] sm:$0xff]
    %v27 = vld [vmem:[%s1 + $0x28] sm:$0xff]
    %v28 = vld [vmem:[%s1 + $0x30] sm:$0xff]
    %v29 = vld [vmem:[%s1 + $0x38] sm:$0xff]
    %v30 = vld [vmem:[%s1 + $0x40] sm:$0xff]
    %v31 = vld [vmem:[%s1 + $0x48] sm:$0xff]
    %v32 = vld [vmem:[%s1 + $0x50] sm:$0xff]
    %v33 = vld [vmem:[%s1 + $0x58] sm:$0xff]
    %v34 = vld [vmem:[%s1 + $0x60] sm:$0xff]
    %v35 = vld [vmem:[%s1 + $0x68] sm:$0xff]
    %v36 = vld [vmem:[%s1 + $0x70] sm:$0xff]
    %v37 = vld [vmem:[%s1 + $0x78] sm:$0xff]
    %39 = vset.pattern.permute.xlu0 0
    %40 = vperm.xlu0 %39, %v22
    %v41 = vpop.permute.xlu0 %40
    %44 = vset.pattern.permute.xlu0 0
    %45 = vperm.xlu0 %44, %v23
    %v46 = vpop.permute.xlu0 %45
    %49 = vset.pattern.permute.xlu0 0
    %50 = vperm.xlu0 %49, %v24
    %v51 = vpop.permute.xlu0 %50
    %54 = vset.pattern.permute.xlu0 0
    %55 = vperm.xlu0 %54, %v25
    %v56 = vpop.permute.xlu0 %55
    %59 = vset.pattern.permute.xlu0 0
    %60 = vperm.xlu0 %59, %v26
    %v61 = vpop.permute.xlu0 %60
    %64 = vset.pattern.permute.xlu0 0
    %65 = vperm.xlu0 %64, %v27
    %v66 = vpop.permute.xlu0 %65
    %69 = vset.pattern.permute.xlu0 0
    %70 = vperm.xlu0 %69, %v28
    %v71 = vpop.permute.xlu0 %70
    %74 = vset.pattern.permute.xlu0 0
    %75 = vperm.xlu0 %74, %v29
    %v76 = vpop.permute.xlu0 %75
    %79 = vset.pattern.permute.xlu0 0
    %80 = vperm.xlu0 %79, %v30
    %v81 = vpop.permute.xlu0 %80
    %84 = vset.pattern.permute.xlu0 0
    %85 = vperm.xlu0 %84, %v31
    %v86 = vpop.permute.xlu0 %85
    %89 = vset.pattern.permute.xlu0 0
    %90 = vperm.xlu0 %89, %v32
    %v91 = vpop.permute.xlu0 %90
    %94 = vset.pattern.permute.xlu0 0
    %95 = vperm.xlu0 %94, %v33
    %v96 = vpop.permute.xlu0 %95
    %99 = vset.pattern.permute.xlu0 0
    %100 = vperm.xlu0 %99, %v34
    %v101 = vpop.permute.xlu0 %100
    %104 = vset.pattern.permute.xlu0 0
    %105 = vperm.xlu0 %104, %v35
    %v106 = vpop.permute.xlu0 %105
    %109 = vset.pattern.permute.xlu0 0
    %110 = vperm.xlu0 %109, %v36
    %v111 = vpop.permute.xlu0 %110
    %114 = vset.pattern.permute.xlu0 0
    %115 = vperm.xlu0 %114, %v37
    %v116 = vpop.permute.xlu0 %115
    %118 = vset.pattern.permute.xlu0 1
    %119 = vperm.xlu0 %118, %v22
    %v120 = vpop.permute.xlu0 %119
    %122 = vset.pattern.permute.xlu0 1
    %123 = vperm.xlu0 %122, %v23
    %v124 = vpop.permute.xlu0 %123
    %126 = vset.pattern.permute.xlu0 1
    %127 = vperm.xlu0 %126, %v24
    %v128 = vpop.permute.xlu0 %127
    %130 = vset.pattern.permute.xlu0 1
    %131 = vperm.xlu0 %130, %v25
    %v132 = vpop.permute.xlu0 %131
    %134 = vset.pattern.permute.xlu0 1
    %135 = vperm.xlu0 %134, %v26
    %v136 = vpop.permute.xlu0 %135
    %138 = vset.pattern.permute.xlu0 1
    %139 = vperm.xlu0 %138, %v27
    %v140 = vpop.permute.xlu0 %139
    %142 = vset.pattern.permute.xlu0 1
    %143 = vperm.xlu0 %142, %v28
    %v144 = vpop.permute.xlu0 %143
    %146 = vset.pattern.permute.xlu0 1
    %147 = vperm.xlu0 %146, %v29
    %v148 = vpop.permute.xlu0 %147
    %150 = vset.pattern.permute.xlu0 1
    %151 = vperm.xlu0 %150, %v30
    %v152 = vpop.permute.xlu0 %151
    %154 = vset.pattern.permute.xlu0 1
    %155 = vperm.xlu0 %154, %v31
    %v156 = vpop.permute.xlu0 %155
    %158 = vset.pattern.permute.xlu0 1
    %159 = vperm.xlu0 %158, %v32
    %v160 = vpop.permute.xlu0 %159
    %162 = vset.pattern.permute.xlu0 1
    %163 = vperm.xlu0 %162, %v33
    %v164 = vpop.permute.xlu0 %163
    %166 = vset.pattern.permute.xlu0 1
    %167 = vperm.xlu0 %166, %v34
    %v168 = vpop.permute.xlu0 %167
    %170 = vset.pattern.permute.xlu0 1
    %171 = vperm.xlu0 %170, %v35
    %v172 = vpop.permute.xlu0 %171
    %174 = vset.pattern.permute.xlu0 1
    %175 = vperm.xlu0 %174, %v36
    %v176 = vpop.permute.xlu0 %175
    %178 = vset.pattern.permute.xlu0 1
    %179 = vperm.xlu0 %178, %v37
    %v180 = vpop.permute.xlu0 %179
    %182 = vset.pattern.permute.xlu0 2
    %183 = vperm.xlu0 %182, %v22
    %v184 = vpop.permute.xlu0 %183
    %186 = vset.pattern.permute.xlu0 2
    %187 = vperm.xlu0 %186, %v23
    %v188 = vpop.permute.xlu0 %187
    %190 = vset.pattern.permute.xlu0 2
    %191 = vperm.xlu0 %190, %v24
    %v192 = vpop.permute.xlu0 %191
    %194 = vset.pattern.permute.xlu0 2
    %195 = vperm.xlu0 %194, %v25
    %v196 = vpop.permute.xlu0 %195
    %198 = vset.pattern.permute.xlu0 2
    %199 = vperm.xlu0 %198, %v26
    %v200 = vpop.permute.xlu0 %199
    %202 = vset.pattern.permute.xlu0 2
    %203 = vperm.xlu0 %202, %v27
    %v204 = vpop.permute.xlu0 %203
    %206 = vset.pattern.permute.xlu0 2
    %207 = vperm.xlu0 %206, %v28
    %v208 = vpop.permute.xlu0 %207
    %210 = vset.pattern.permute.xlu0 2
    %211 = vperm.xlu0 %210, %v29
    %v212 = vpop.permute.xlu0 %211
    %214 = vset.pattern.permute.xlu0 2
    %215 = vperm.xlu0 %214, %v30
    %v216 = vpop.permute.xlu0 %215
    %218 = vset.pattern.permute.xlu0 2
    %219 = vperm.xlu0 %218, %v31
    %v220 = vpop.permute.xlu0 %219
    %222 = vset.pattern.permute.xlu0 2
    %223 = vperm.xlu0 %222, %v32
    %v224 = vpop.permute.xlu0 %223
    %226 = vset.pattern.permute.xlu0 2
    %227 = vperm.xlu0 %226, %v33
    %v228 = vpop.permute.xlu0 %227
    %230 = vset.pattern.permute.xlu0 2
    %231 = vperm.xlu0 %230, %v34
    %v232 = vpop.permute.xlu0 %231
    %234 = vset.pattern.permute.xlu0 2
    %235 = vperm.xlu0 %234, %v35
    %v236 = vpop.permute.xlu0 %235
    %238 = vset.pattern.permute.xlu0 2
    %239 = vperm.xlu0 %238, %v36
    %v240 = vpop.permute.xlu0 %239
    %242 = vset.pattern.permute.xlu0 2
    %243 = vperm.xlu0 %242, %v37
    %v244 = vpop.permute.xlu0 %243
    %246 = vset.pattern.permute.xlu0 3
    %247 = vperm.xlu0 %246, %v22
    %v248 = vpop.permute.xlu0 %247
    %250 = vset.pattern.permute.xlu0 3
    %251 = vperm.xlu0 %250, %v23
    %v252 = vpop.permute.xlu0 %251
    %254 = vset.pattern.permute.xlu0 3
    %255 = vperm.xlu0 %254, %v24
    %v256 = vpop.permute.xlu0 %255
    %258 = vset.pattern.permute.xlu0 3
    %259 = vperm.xlu0 %258, %v25
    %v260 = vpop.permute.xlu0 %259
    %262 = vset.pattern.permute.xlu0 3
    %263 = vperm.xlu0 %262, %v26
    %v264 = vpop.permute.xlu0 %263
    %266 = vset.pattern.permute.xlu0 3
    %267 = vperm.xlu0 %266, %v27
    %v268 = vpop.permute.xlu0 %267
    %270 = vset.pattern.permute.xlu0 3
    %271 = vperm.xlu0 %270, %v28
    %v272 = vpop.permute.xlu0 %271
    %274 = vset.pattern.permute.xlu0 3
    %275 = vperm.xlu0 %274, %v29
    %v276 = vpop.permute.xlu0 %275
    %278 = vset.pattern.permute.xlu0 3
    %279 = vperm.xlu0 %278, %v30
    %v280 = vpop.permute.xlu0 %279
    %282 = vset.pattern.permute.xlu0 3
    %283 = vperm.xlu0 %282, %v31
    %v284 = vpop.permute.xlu0 %283
    %286 = vset.pattern.permute.xlu0 3
    %287 = vperm.xlu0 %286, %v32
    %v288 = vpop.permute.xlu0 %287
    %290 = vset.pattern.permute.xlu0 3
    %291 = vperm.xlu0 %290, %v33
    %v292 = vpop.permute.xlu0 %291
    %294 = vset.pattern.permute.xlu0 3
    %295 = vperm.xlu0 %294, %v34
    %v296 = vpop.permute.xlu0 %295
    %298 = vset.pattern.permute.xlu0 3
    %299 = vperm.xlu0 %298, %v35
    %v300 = vpop.permute.xlu0 %299
    %302 = vset.pattern.permute.xlu0 3
    %303 = vperm.xlu0 %302, %v36
    %v304 = vpop.permute.xlu0 %303
    %306 = vset.pattern.permute.xlu0 3
    %307 = vperm.xlu0 %306, %v37
    %v308 = vpop.permute.xlu0 %307
    %v310 = vld [vmem:[%s2] sm:$0xff]
    %v311 = vld [vmem:[%s2 + $0x8] sm:$0xff]
    %v312 = vld [vmem:[%s2 + $0x10] sm:$0xff]
    %v313 = vld [vmem:[%s2 + $0x18] sm:$0xff]
    %v314 = vld [vmem:[%s2 + $0x20] sm:$0xff]
    %v315 = vld [vmem:[%s2 + $0x28] sm:$0xff]
    %v316 = vld [vmem:[%s2 + $0x30] sm:$0xff]
    %v317 = vld [vmem:[%s2 + $0x38] sm:$0xff]
    %v318 = vld [vmem:[%s2 + $0x40] sm:$0xff]
    %v319 = vld [vmem:[%s2 + $0x48] sm:$0xff]
    %v320 = vld [vmem:[%s2 + $0x50] sm:$0xff]
    %v321 = vld [vmem:[%s2 + $0x58] sm:$0xff]
    %v322 = vld [vmem:[%s2 + $0x60] sm:$0xff]
    %v323 = vld [vmem:[%s2 + $0x68] sm:$0xff]
    %v324 = vld [vmem:[%s2 + $0x70] sm:$0xff]
    %v325 = vld [vmem:[%s2 + $0x78] sm:$0xff]
    %327 = vset.pattern.permute.xlu0 0
    %328 = vperm.xlu0 %327, %v310
    %v329 = vpop.permute.xlu0 %328
    %332 = vset.pattern.permute.xlu0 0
    %333 = vperm.xlu0 %332, %v311
    %v334 = vpop.permute.xlu0 %333
    %337 = vset.pattern.permute.xlu0 0
    %338 = vperm.xlu0 %337, %v312
    %v339 = vpop.permute.xlu0 %338
    %342 = vset.pattern.permute.xlu0 0
    %343 = vperm.xlu0 %342, %v313
    %v344 = vpop.permute.xlu0 %343
    %347 = vset.pattern.permute.xlu0 0
    %348 = vperm.xlu0 %347, %v314
    %v349 = vpop.permute.xlu0 %348
    %352 = vset.pattern.permute.xlu0 0
    %353 = vperm.xlu0 %352, %v315
    %v354 = vpop.permute.xlu0 %353
    %357 = vset.pattern.permute.xlu0 0
    %358 = vperm.xlu0 %357, %v316
    %v359 = vpop.permute.xlu0 %358
    %362 = vset.pattern.permute.xlu0 0
    %363 = vperm.xlu0 %362, %v317
    %v364 = vpop.permute.xlu0 %363
    %367 = vset.pattern.permute.xlu0 0
    %368 = vperm.xlu0 %367, %v318
    %v369 = vpop.permute.xlu0 %368
    %372 = vset.pattern.permute.xlu0 0
    %373 = vperm.xlu0 %372, %v319
    %v374 = vpop.permute.xlu0 %373
    %377 = vset.pattern.permute.xlu0 0
    %378 = vperm.xlu0 %377, %v320
    %v379 = vpop.permute.xlu0 %378
    %382 = vset.pattern.permute.xlu0 0
    %383 = vperm.xlu0 %382, %v321
    %v384 = vpop.permute.xlu0 %383
    %387 = vset.pattern.permute.xlu0 0
    %388 = vperm.xlu0 %387, %v322
    %v389 = vpop.permute.xlu0 %388
    %392 = vset.pattern.permute.xlu0 0
    %393 = vperm.xlu0 %392, %v323
    %v394 = vpop.permute.xlu0 %393
    %397 = vset.pattern.permute.xlu0 0
    %398 = vperm.xlu0 %397, %v324
    %v399 = vpop.permute.xlu0 %398
    %402 = vset.pattern.permute.xlu0 0
    %403 = vperm.xlu0 %402, %v325
    %v404 = vpop.permute.xlu0 %403
    %v406 = vld [vmem:[%s3] sm:$0xff]
    %v407 = vld [vmem:[%s3 + $0x8] sm:$0xff]
    %v408 = vld [vmem:[%s3 + $0x10] sm:$0xff]
    %v409 = vld [vmem:[%s3 + $0x18] sm:$0xff]
    %v410 = vld [vmem:[%s3 + $0x20] sm:$0xff]
    %v411 = vld [vmem:[%s3 + $0x28] sm:$0xff]
    %v412 = vld [vmem:[%s3 + $0x30] sm:$0xff]
    %v413 = vld [vmem:[%s3 + $0x38] sm:$0xff]
    %v414 = vld [vmem:[%s3 + $0x40] sm:$0xff]
    %v415 = vld [vmem:[%s3 + $0x48] sm:$0xff]
    %v416 = vld [vmem:[%s3 + $0x50] sm:$0xff]
    %v417 = vld [vmem:[%s3 + $0x58] sm:$0xff]
    %v418 = vld [vmem:[%s3 + $0x60] sm:$0xff]
    %v419 = vld [vmem:[%s3 + $0x68] sm:$0xff]
    %v420 = vld [vmem:[%s3 + $0x70] sm:$0xff]
    %v421 = vld [vmem:[%s3 + $0x78] sm:$0xff]
    %423 = vset.pattern.permute.xlu0 0
    %424 = vperm.xlu0 %423, %v406
    %v425 = vpop.permute.xlu0 %424
    %428 = vset.pattern.permute.xlu0 0
    %429 = vperm.xlu0 %428, %v407
    %v430 = vpop.permute.xlu0 %429
    %433 = vset.pattern.permute.xlu0 0
    %434 = vperm.xlu0 %433, %v408
    %v435 = vpop.permute.xlu0 %434
    %438 = vset.pattern.permute.xlu0 0
    %439 = vperm.xlu0 %438, %v409
    %v440 = vpop.permute.xlu0 %439
    %443 = vset.pattern.permute.xlu0 0
    %444 = vperm.xlu0 %443, %v410
    %v445 = vpop.permute.xlu0 %444
    %448 = vset.pattern.permute.xlu0 0
    %449 = vperm.xlu0 %448, %v411
    %v450 = vpop.permute.xlu0 %449
    %453 = vset.pattern.permute.xlu0 0
    %454 = vperm.xlu0 %453, %v412
    %v455 = vpop.permute.xlu0 %454
    %458 = vset.pattern.permute.xlu0 0
    %459 = vperm.xlu0 %458, %v413
    %v460 = vpop.permute.xlu0 %459
    %463 = vset.pattern.permute.xlu0 0
    %464 = vperm.xlu0 %463, %v414
    %v465 = vpop.permute.xlu0 %464
    %468 = vset.pattern.permute.xlu0 0
    %469 = vperm.xlu0 %468, %v415
    %v470 = vpop.permute.xlu0 %469
    %473 = vset.pattern.permute.xlu0 0
    %474 = vperm.xlu0 %473, %v416
    %v475 = vpop.permute.xlu0 %474
    %478 = vset.pattern.permute.xlu0 0
    %479 = vperm.xlu0 %478, %v417
    %v480 = vpop.permute.xlu0 %479
    %483 = vset.pattern.permute.xlu0 0
    %484 = vperm.xlu0 %483, %v418
    %v485 = vpop.permute.xlu0 %484
    %488 = vset.pattern.permute.xlu0 0
    %489 = vperm.xlu0 %488, %v419
    %v490 = vpop.permute.xlu0 %489
    %493 = vset.pattern.permute.xlu0 0
    %494 = vperm.xlu0 %493, %v420
    %v495 = vpop.permute.xlu0 %494
    %498 = vset.pattern.permute.xlu0 0
    %499 = vperm.xlu0 %498, %v421
    %v500 = vpop.permute.xlu0 %499
    %s502 = sld [smem:[#allocation2]]
    %v503 = vld [vmem:[%s0] sm:$0xf]
    %v504 = vlaneseq
    %v505 = vshrl.u32 %v504, 7
    %v506 = vsub.s32 0, %v505
    %v507 = vrot.slane %v503, %v506
    %v508 = vmul.f32 %v41, %v507
    %v509 = vmul.f32 %v46, %v507
    %v510 = vmul.f32 %v51, %v507
    %v511 = vmul.f32 %v56, %v507
    %v512 = vmul.f32 %v61, %v507
    %v513 = vmul.f32 %v66, %v507
    %v514 = vmul.f32 %v71, %v507
    %v515 = vmul.f32 %v76, %v507
    %v516 = vmul.f32 %v81, %v507
    %v517 = vmul.f32 %v86, %v507
    %v518 = vmul.f32 %v91, %v507
    %v519 = vmul.f32 %v96, %v507
    %v520 = vmul.f32 %v101, %v507
    %v521 = vmul.f32 %v106, %v507
    %v522 = vmul.f32 %v111, %v507
    %v523 = vmul.f32 %v116, %v507
    %v524 = vadd.f32 %v329, %v508
    %v525 = vadd.f32 %v334, %v509
    %v526 = vadd.f32 %v339, %v510
    %v527 = vadd.f32 %v344, %v511
    %v528 = vadd.f32 %v349, %v512
    %v529 = vadd.f32 %v354, %v513
    %v530 = vadd.f32 %v359, %v514
    %v531 = vadd.f32 %v364, %v515
    %v532 = vadd.f32 %v369, %v516
    %v533 = vadd.f32 %v374, %v517
    %v534 = vadd.f32 %v379, %v518
    %v535 = vadd.f32 %v384, %v519
    %v536 = vadd.f32 %v389, %v520
    %v537 = vadd.f32 %v394, %v521
    %v538 = vadd.f32 %v399, %v522
    %v539 = vadd.f32 %v404, %v523
    %v540 = vlaneseq
    %v541 = vshrl.u32 %v540, 7
    %v542 = vsub.s32 1, %v541
    %v543 = vrot.slane %v503, %v542
    %v544 = vmul.f32 %v120, %v543
    %v545 = vmul.f32 %v124, %v543
    %v546 = vmul.f32 %v128, %v543
    %v547 = vmul.f32 %v132, %v543
    %v548 = vmul.f32 %v136, %v543
    %v549 = vmul.f32 %v140, %v543
    %v550 = vmul.f32 %v144, %v543
    %v551 = vmul.f32 %v148, %v543
    %v552 = vmul.f32 %v152, %v543
    %v553 = vmul.f32 %v156, %v543
    %v554 = vmul.f32 %v160, %v543
    %v555 = vmul.f32 %v164, %v543
    %v556 = vmul.f32 %v168, %v543
    %v557 = vmul.f32 %v172, %v543
    %v558 = vmul.f32 %v176, %v543
    %v559 = vmul.f32 %v180, %v543
    %v560 = vadd.f32 %v524, %v544
    %v561 = vadd.f32 %v525, %v545
    %v562 = vadd.f32 %v526, %v546
    %v563 = vadd.f32 %v527, %v547
    %v564 = vadd.f32 %v528, %v548
    %v565 = vadd.f32 %v529, %v549
    %v566 = vadd.f32 %v530, %v550
    %v567 = vadd.f32 %v531, %v551
    %v568 = vadd.f32 %v532, %v552
    %v569 = vadd.f32 %v533, %v553
    %v570 = vadd.f32 %v534, %v554
    %v571 = vadd.f32 %v535, %v555
    %v572 = vadd.f32 %v536, %v556
    %v573 = vadd.f32 %v537, %v557
    %v574 = vadd.f32 %v538, %v558
    %v575 = vadd.f32 %v539, %v559
    %v576 = vlaneseq
    %v577 = vshrl.u32 %v576, 7
    %v578 = vsub.s32 2, %v577
    %v579 = vrot.slane %v503, %v578
    %v580 = vmul.f32 %v184, %v579
    %v581 = vmul.f32 %v188, %v579
    %v582 = vmul.f32 %v192, %v579
    %v583 = vmul.f32 %v196, %v579
    %v584 = vmul.f32 %v200, %v579
    %v585 = vmul.f32 %v204, %v579
    %v586 = vmul.f32 %v208, %v579
    %v587 = vmul.f32 %v212, %v579
    %v588 = vmul.f32 %v216, %v579
    %v589 = vmul.f32 %v220, %v579
    %v590 = vmul.f32 %v224, %v579
    %v591 = vmul.f32 %v228, %v579
    %v592 = vmul.f32 %v232, %v579
    %v593 = vmul.f32 %v236, %v579
    %v594 = vmul.f32 %v240, %v579
    %v595 = vmul.f32 %v244, %v579
    %v596 = vadd.f32 %v560, %v580
    %v597 = vadd.f32 %v561, %v581
    %v598 = vadd.f32 %v562, %v582
    %v599 = vadd.f32 %v563, %v583
    %v600 = vadd.f32 %v564, %v584
    %v601 = vadd.f32 %v565, %v585
    %v602 = vadd.f32 %v566, %v586
    %v603 = vadd.f32 %v567, %v587
    %v604 = vadd.f32 %v568, %v588
    %v605 = vadd.f32 %v569, %v589
    %v606 = vadd.f32 %v570, %v590
    %v607 = vadd.f32 %v571, %v591
    %v608 = vadd.f32 %v572, %v592
    %v609 = vadd.f32 %v573, %v593
    %v610 = vadd.f32 %v574, %v594
    %v611 = vadd.f32 %v575, %v595
    %v612 = vlaneseq
    %v613 = vshrl.u32 %v612, 7
    %v614 = vsub.s32 3, %v613
    %v615 = vrot.slane %v503, %v614
    %v616 = vmul.f32 %v248, %v615
    %v617 = vmul.f32 %v252, %v615
    %v618 = vmul.f32 %v256, %v615
    %v619 = vmul.f32 %v260, %v615
    %v620 = vmul.f32 %v264, %v615
    %v621 = vmul.f32 %v268, %v615
    %v622 = vmul.f32 %v272, %v615
    %v623 = vmul.f32 %v276, %v615
    %v624 = vmul.f32 %v280, %v615
    %v625 = vmul.f32 %v284, %v615
    %v626 = vmul.f32 %v288, %v615
    %v627 = vmul.f32 %v292, %v615
    %v628 = vmul.f32 %v296, %v615
    %v629 = vmul.f32 %v300, %v615
    %v630 = vmul.f32 %v304, %v615
    %v631 = vmul.f32 %v308, %v615
    %v632 = vadd.f32 %v596, %v616
    %v633 = vadd.f32 %v597, %v617
    %v634 = vadd.f32 %v598, %v618
    %v635 = vadd.f32 %v599, %v619
    %v636 = vadd.f32 %v600, %v620
    %v637 = vadd.f32 %v601, %v621
    %v638 = vadd.f32 %v602, %v622
    %v639 = vadd.f32 %v603, %v623
    %v640 = vadd.f32 %v604, %v624
    %v641 = vadd.f32 %v605, %v625
    %v642 = vadd.f32 %v606, %v626
    %v643 = vadd.f32 %v607, %v627
    %v644 = vadd.f32 %v608, %v628
    %v645 = vadd.f32 %v609, %v629
    %v646 = vadd.f32 %v610, %v630
    %v647 = vadd.f32 %v611, %v631
    %v648 = vmax.f32 %v632, 0.0
    %v649 = vmax.f32 %v633, 0.0
    %v650 = vmax.f32 %v634, 0.0
    %v651 = vmax.f32 %v635, 0.0
    %v652 = vmax.f32 %v636, 0.0
    %v653 = vmax.f32 %v637, 0.0
    %v654 = vmax.f32 %v638, 0.0
    %v655 = vmax.f32 %v639, 0.0
    %v656 = vmax.f32 %v640, 0.0
    %v657 = vmax.f32 %v641, 0.0
    %v658 = vmax.f32 %v642, 0.0
    %v659 = vmax.f32 %v643, 0.0
    %v660 = vmax.f32 %v644, 0.0
    %v661 = vmax.f32 %v645, 0.0
    %v662 = vmax.f32 %v646, 0.0
    %v663 = vmax.f32 %v647, 0.0
    %v664 = vmul.f32 %v425, %v648
    %v665 = vmul.f32 %v430, %v649
    %v666 = vmul.f32 %v435, %v650
    %v667 = vmul.f32 %v440, %v651
    %v668 = vmul.f32 %v445, %v652
    %v669 = vmul.f32 %v450, %v653
    %v670 = vmul.f32 %v455, %v654
    %v671 = vmul.f32 %v460, %v655
    %v672 = vmul.f32 %v465, %v656
    %v673 = vmul.f32 %v470, %v657
    %v674 = vmul.f32 %v475, %v658
    %v675 = vmul.f32 %v480, %v659
    %v676 = vmul.f32 %v485, %v660
    %v677 = vmul.f32 %v490, %v661
    %v678 = vmul.f32 %v495, %v662
    %v679 = vmul.f32 %v500, %v663
    %vm680 = vcmask 64512
    %v681 = vsel %vm680, %v664, 0.0
    %v682 = vsel %vm680, %v665, 0.0
    %v683 = vadd.f32 %v681, %v682
    %v684 = vsel %vm680, %v666, 0.0
    %v685 = vadd.f32 %v683, %v684
    %v686 = vsel %vm680, %v667, 0.0
    %v687 = vadd.f32 %v685, %v686
    %v688 = vsel %vm680, %v668, 0.0
    %v689 = vadd.f32 %v687, %v688
    %v690 = vsel %vm680, %v669, 0.0
    %v691 = vadd.f32 %v689, %v690
    %v692 = vsel %vm680, %v670, 0.0
    %v693 = vadd.f32 %v691, %v692
    %v694 = vsel %vm680, %v671, 0.0
    %v695 = vadd.f32 %v693, %v694
    %v696 = vsel %vm680, %v672, 0.0
    %v697 = vadd.f32 %v695, %v696
    %v698 = vsel %vm680, %v673, 0.0
    %v699 = vadd.f32 %v697, %v698
    %v700 = vsel %vm680, %v674, 0.0
    %v701 = vadd.f32 %v699, %v700
    %v702 = vsel %vm680, %v675, 0.0
    %v703 = vadd.f32 %v701, %v702
    %v704 = vsel %vm680, %v676, 0.0
    %v705 = vadd.f32 %v703, %v704
    %v706 = vsel %vm680, %v677, 0.0
    %v707 = vadd.f32 %v705, %v706
    %v708 = vsel %vm680, %v678, 0.0
    %v709 = vadd.f32 %v707, %v708
    %v710 = vsel %vm680, %v679, 0.0
    %v711 = vadd.f32 %v709, %v710
    %v712 = vrot.slane %v711, 4
    %v713 = vadd.f32 %v711, %v712
    %v714 = vrot.slane %v713, 2
    %v715 = vadd.f32 %v713, %v714
    %v716 = vrot.slane %v715, 1
    %v717 = vadd.f32 %v715, %v716
    %v718 = vstv %s502
    %v719 = vadd.f32 %v717, %v718
    %vm720 = vcmask 57344
    %721 = vst.msk [vmem:[#allocation3] sm:$0x1] %vm720, %v719
    // Predicated region
    $region22: #{value_net_forward.1} parent=1 // pred_check
      _
    $region23: #{value_net_forward.1} parent=1 // pred_check_branch
      %723 = sbr.rel (0) target = $region25
    $region24: #{value_net_forward.1} parent=1 // pred_region
      %s725 = ssub.s32 16, 16
      %726 = vsyncadd [#allocation4], %s725
      %s728 = sshll.u32 [#allocation3], 4
      %s729 = int_to_ptr.vmem [resolvable:$true] %s728
      %731 = dma.vmem_to_hbm [thread:$0]  %s729, 16, %s5, [#allocation4]
    $region25: #{value_net_forward.1} parent=1 // pred_fallthru
      _
    // Predicated region
    $region26: #{value_net_forward.1} parent=1 // pred_check
      _
    $region27: #{value_net_forward.1} parent=1 // pred_check_branch
      %733 = sbr.rel (0) target = $region29
    $region28: #{value_net_forward.1} parent=1 // pred_region
      %734 = dma.done [#allocation4], 16
    $region29: #{value_net_forward.1} parent=1 // pred_fallthru
      _
    %735 = vsyncpa [#allocation4], 1

</llo_original>
